<compile_context>
chip_gen: v5e
topology: v5e:2x2
jax: 0.10.0
libtpu: 0.0.40
codegen_flags: <defaults>
</compile_context>

<pallas_src>
import functools

import jax
import jax.numpy as jnp
import numpy as np
from jax.experimental import pallas as pl
from jax.experimental.pallas import tpu as pltpu


# Row layout of the packed (10, H) f32 vector slab.
_BAV, _BAT, _VAV, _VAT, _BH, _BV, _BQ, _BBV, _BBT, _WB = range(10)


def _softmax_time(x):
    """Softmax over axis=1 of a (B, T, 1) score tensor (EUP reciprocal)."""
    m = jnp.max(x, axis=1, keepdims=True)
    e = jnp.exp(x - m)
    s = jnp.sum(e, axis=1, keepdims=True)
    return e * pl.reciprocal(s, approx=True)


def mm_attention_kernel(h_ref, hf_ref, ht_ref, w_ref, vec_ref, out_ref, *,
                        inv_attention: bool):
    f32 = jnp.float32
    bf16 = jnp.bfloat16

    B, Tv, H = hf_ref.shape
    _, Tt, _ = ht_ref.shape

    h = h_ref[...]                        # (B, H)  f32
    hf = hf_ref[...]                      # (B, Tv, H) f32
    ht = ht_ref[...]                      # (B, Tt, H) f32

    def vrow(i):                          # (1, H) f32 bias/vector row
        return vec_ref[i:i + 1, :]

    bav, bat = vrow(_BAV), vrow(_BAT)
    Vav, Vat = vrow(_VAV), vrow(_VAT)
    bh, bv, bq = vrow(_BH), vrow(_BV), vrow(_BQ)
    bbv, bbt, wb = vrow(_BBV), vrow(_BBT), vrow(_WB)

    # --- fused h-projection: [Uav | Uat | Whh | Wb] -> (B, 4H), one matmul ---
    hproj = jnp.dot(h.astype(bf16), w_ref[:, 0:4 * H],
                    preferred_element_type=f32)
    # Fold the attention biases in once at (B,1,H) instead of across (B,T,H).
    Uhv_b = hproj[:, 0 * H:1 * H][:, None, :] + bav   # (B, 1, H)
    Uht_b = hproj[:, 1 * H:2 * H][:, None, :] + bat   # (B, 1, H)
    Whh_h = hproj[:, 2 * H:3 * H]                     # (B, H)
    Wbs = hproj[:, 3 * H:4 * H]                       # (B, H)

    # --- time-step projections (Wav / Wat) ---
    Wsv = jnp.dot(hf.astype(bf16).reshape(B * Tv, H), w_ref[:, 8 * H:9 * H],
                  preferred_element_type=f32).reshape(B, Tv, H)
    Wst = jnp.dot(ht.astype(bf16).reshape(B * Tt, H), w_ref[:, 9 * H:10 * H],
                  preferred_element_type=f32).reshape(B, Tt, H)

    tanh_v = jnp.tanh(Wsv + Uhv_b)                   # (B, Tv, H) f32
    tanh_t = jnp.tanh(Wst + Uht_b)                   # (B, Tt, H) f32

    score_v = jnp.sum(tanh_v * Vav, axis=-1, keepdims=True)   # (B, Tv, 1)
    score_t = jnp.sum(tanh_t * Vat, axis=-1, keepdims=True)   # (B, Tt, 1)
    if inv_attention:                                # static Python flag
        score_v = -score_v
        score_t = -score_t

    att_v = _softmax_time(score_v)
    att_t = _softmax_time(score_t)

    hv_sum = jnp.sum(att_v * hf, axis=1)             # (B, H) f32
    ht_sum = jnp.sum(att_t * ht, axis=1)             # (B, H) f32

    # --- fused summary projections: [WvT | Vbv] and [WqT | Vbt] ---
    v_proj = jnp.dot(hv_sum.astype(bf16), w_ref[:, 4 * H:6 * H],
                     preferred_element_type=f32)     # (B, 2H)
    t_proj = jnp.dot(ht_sum.astype(bf16), w_ref[:, 6 * H:8 * H],
                     preferred_element_type=f32)     # (B, 2H)

    hv_sum2 = v_proj[:, 0:H] + bv
    ht_sum2 = t_proj[:, 0:H] + bq
    mv1 = v_proj[:, H:2 * H] + bbv + Wbs
    mt1 = t_proj[:, H:2 * H] + bbt + Wbs

    # --- modality gate: 2-way softmax over [scores(mv1); scores(mt1)] rows ---
    # (equivalent to softmax over the (2B,) concat in the reference, without
    #  materializing the concat)
    sv = jnp.sum(jnp.tanh(mv1) * wb, axis=-1, keepdims=True)   # (B, 1)
    st = jnp.sum(jnp.tanh(mt1) * wb, axis=-1, keepdims=True)   # (B, 1)
    m = jnp.maximum(jnp.max(sv, axis=0, keepdims=True),
                    jnp.max(st, axis=0, keepdims=True))        # (1, 1)
    ev = jnp.exp(sv - m)
    et = jnp.exp(st - m)
    denom = (jnp.sum(ev, axis=0, keepdims=True)
             + jnp.sum(et, axis=0, keepdims=True))             # (1, 1)
    inv = pl.reciprocal(denom, approx=True)[0, 0]
    beta0 = ev[0, 0] * inv
    if B > 1:
        # concat row index 1 is mv1 of batch 1 (matches reference for B>1)
        beta1 = ev[1, 0] * inv
    else:
        beta1 = et[0, 0] * inv

    out = jnp.tanh(Whh_h + beta0 * hv_sum2 + beta1 * ht_sum2 + bh)
    out_ref[...] = out.astype(out_ref.dtype)


def pack_params(p):
    """Fuse the 20 parameters into one bf16 weight slab and one f32 bias slab."""
    w_packed = jnp.concatenate(
        [p["Uav"], p["Uat"], p["Whh"], p["Wb"],        # cols [0 : 4H)  (h proj)
         p["WvT"], p["Vbv"],                           # cols [4H: 6H)  (hv_sum)
         p["WqT"], p["Vbt"],                           # cols [6H: 8H)  (ht_sum)
         p["Wav"], p["Wat"]],                          # cols [8H:10H)  (time)
        axis=1).astype(jnp.bfloat16)                   # (H, 10H) bf16
    vec_packed = jnp.concatenate(
        [p["bav"], p["bat"], p["Vav"], p["Vat"], p["bh"],
         p["bv"], p["bq"], p["bbv"], p["bbt"], p["wb"]],
        axis=0).astype(jnp.float32)                    # (10, H) f32
    return w_packed, vec_packed


def multimodal_attention(h, hidden_frames, hidden_text, w_packed, vec_packed,
                         inv_attention=False):
    """Calls the Pallas kernel (inv_attention is a compile-time flag)."""
    B, H = h.shape
    kernel = functools.partial(mm_attention_kernel,
                               inv_attention=bool(inv_attention))
    return pl.pallas_call(
        kernel,
        out_shape=jax.ShapeDtypeStruct((B, H), jnp.float32),
        in_specs=[pl.BlockSpec(memory_space=pltpu.MemorySpace.VMEM)] * 5,
        out_specs=pl.BlockSpec(memory_space=pltpu.MemorySpace.VMEM),
    )(h, hidden_frames, hidden_text, w_packed, vec_packed)


def reference(h, hf, ht, p, inv_attention=False):
    """Pure-JAX reproduction of the PyTorch forward (bf16 matmul operands)."""
    bf = lambda x: x.astype(jnp.bfloat16).astype(jnp.float32)
    Uhv = (bf(h) @ bf(p["Uav"]))[:, None, :]
    Uht = (bf(h) @ bf(p["Uat"]))[:, None, :]
    Wsv = jnp.einsum("btd,de->bte", bf(hf), bf(p["Wav"]))
    Wst = jnp.einsum("btd,de->bte", bf(ht), bf(p["Wat"]))
    att_v = jnp.sum(jnp.tanh(Wsv + Uhv + p["bav"]) * p["Vav"], axis=-1)
    att_t = jnp.sum(jnp.tanh(Wst + Uht + p["bat"]) * p["Vat"], axis=-1)
    if inv_attention:
        att_v, att_t = -att_v, -att_t
    att_v = jax.nn.softmax(att_v, axis=1)[:, :, None]
    att_t = jax.nn.softmax(att_t, axis=1)[:, :, None]
    hv_sum = jnp.sum(att_v * hf, axis=1)
    ht_sum = jnp.sum(att_t * ht, axis=1)
    hv_sum2 = bf(hv_sum) @ bf(p["WvT"]) + p["bv"]
    ht_sum2 = bf(ht_sum) @ bf(p["WqT"]) + p["bq"]
    Wbs = bf(h) @ bf(p["Wb"])
    mt1 = bf(ht_sum) @ bf(p["Vbt"]) + p["bbt"] + Wbs
    mv1 = bf(hv_sum) @ bf(p["Vbv"]) + p["bbv"] + Wbs
    mtv = jnp.tanh(jnp.concatenate([mv1, mt1], axis=0))
    mtv2 = jnp.sum(mtv * p["wb"], axis=-1)
    beta = jax.nn.softmax(mtv2, axis=0)
    out = jnp.tanh(bf(h) @ bf(p["Whh"]) + beta[0] * hv_sum2
                   + beta[1] * ht_sum2 + p["bh"])
    return out


def init_params(key, H):
    ks = jax.random.split(key, 16)
    nrm = lambda k, shape, std: std * jax.random.normal(k, shape, jnp.float32)
    # nn.Linear weights are (out, in); store the transpose for x @ W.T.
    Wv_lin = nrm(ks[10], (H, H), 0.05)
    Wq_lin = nrm(ks[11], (H, H), 0.05)
    return {
        "Wav": nrm(ks[0], (H, H), 0.1),
        "Wat": nrm(ks[1], (H, H), 0.1),
        "Uav": nrm(ks[2], (H, H), 0.1),
        "Uat": nrm(ks[3], (H, H), 0.1),
        "Vav": nrm(ks[4], (1, H), 0.1),
        "Vat": nrm(ks[5], (1, H), 0.1),
        "bav": jnp.zeros((1, H), jnp.float32),
        "bat": jnp.zeros((1, H), jnp.float32),
        "Whh": nrm(ks[6], (H, H), 0.1),
        "bh": jnp.zeros((1, H), jnp.float32),
        "WvT": Wv_lin.T,
        "bv": nrm(ks[12], (1, H), 0.05),
        "WqT": Wq_lin.T,
        "bq": nrm(ks[13], (1, H), 0.05),
        "Wb": nrm(ks[7], (H, H), 0.01),
        "Vbv": nrm(ks[8], (H, H), 0.01),
        "Vbt": nrm(ks[9], (H, H), 0.01),
        "bbv": jnp.zeros((1, H), jnp.float32),
        "bbt": jnp.zeros((1, H), jnp.float32),
        "wb": nrm(ks[14], (1, H), 0.01),
    }


if __name__ == "__main__":
    H = 128
    key = jax.random.PRNGKey(0)
    k_data, k_p = jax.random.split(key, 2)

    params = init_params(k_p, H)
    w_packed, vec_packed = pack_params(params)   # packed once, reused per call

    # B=1 is the shape HME_M actually uses (sm_q2); B=2 exercises generality.
    for (B, Tv, Tt) in [(1, 16, 8), (2, 16, 8)]:
        kh, kf, kt = jax.random.split(jax.random.fold_in(k_data, B), 3)
        h = jax.random.normal(kh, (B, H), jnp.float32)
        hidden_frames = jax.random.normal(kf, (B, Tv, H), jnp.float32)
        hidden_text = jax.random.normal(kt, (B, Tt, H), jnp.float32)

        out = multimodal_attention(h, hidden_frames, hidden_text,
                                   w_packed, vec_packed)
        out = jax.block_until_ready(out)
        ref = jax.block_until_ready(reference(h, hidden_frames, hidden_text,
                                              params))
        assert out.shape == (B, H)
        # bf16 matmul operands + EUP approx reciprocal -> ~1e-3 level error.
        np.testing.assert_allclose(np.asarray(out), np.asarray(ref),
                                   rtol=5e-3, atol=5e-3)

    print("KERNEL_OK")
</pallas_src>

<mosaic_0001>
module attributes {stable_mosaic.version = 11 : i64} {
  func.func @mm_attention_kernel(%arg0: memref<1x128xf32, #tpu.memory_space<vmem>>, %arg1: memref<1x16x128xf32, #tpu.memory_space<vmem>>, %arg2: memref<1x8x128xf32, #tpu.memory_space<vmem>>, %arg3: memref<128x1280xbf16, #tpu.memory_space<vmem>>, %arg4: memref<10x128xf32, #tpu.memory_space<vmem>>, %arg5: memref<1x128xf32, #tpu.memory_space<vmem>>) attributes {dimension_semantics = [], scalar_prefetch = 0 : i64, scratch_operands = 0 : i64, tpu.core_type = #tpu.core_type<tc>} {
    %c0 = arith.constant 0 : index
    %c0_0 = arith.constant 0 : index
    %0 = vector.load %arg0[%c0, %c0_0] : memref<1x128xf32, #tpu.memory_space<vmem>>, vector<1x128xf32>
    %c0_1 = arith.constant 0 : index
    %c0_2 = arith.constant 0 : index
    %c0_3 = arith.constant 0 : index
    %1 = vector.load %arg1[%c0_1, %c0_2, %c0_3] : memref<1x16x128xf32, #tpu.memory_space<vmem>>, vector<1x16x128xf32>
    %c0_4 = arith.constant 0 : index
    %c0_5 = arith.constant 0 : index
    %c0_6 = arith.constant 0 : index
    %2 = vector.load %arg2[%c0_4, %c0_5, %c0_6] : memref<1x8x128xf32, #tpu.memory_space<vmem>>, vector<1x8x128xf32>
    %c0_7 = arith.constant 0 : index
    %c0_8 = arith.constant 0 : index
    %3 = vector.load %arg4[%c0_7, %c0_8] : memref<10x128xf32, #tpu.memory_space<vmem>>, vector<1x128xf32>
    %c1 = arith.constant 1 : index
    %c0_9 = arith.constant 0 : index
    %4 = vector.load %arg4[%c1, %c0_9] : memref<10x128xf32, #tpu.memory_space<vmem>>, vector<1x128xf32>
    %c2 = arith.constant 2 : index
    %c0_10 = arith.constant 0 : index
    %5 = vector.load %arg4[%c2, %c0_10] : memref<10x128xf32, #tpu.memory_space<vmem>>, vector<1x128xf32>
    %c3 = arith.constant 3 : index
    %c0_11 = arith.constant 0 : index
    %6 = vector.load %arg4[%c3, %c0_11] : memref<10x128xf32, #tpu.memory_space<vmem>>, vector<1x128xf32>
    %c4 = arith.constant 4 : index
    %c0_12 = arith.constant 0 : index
    %7 = vector.load %arg4[%c4, %c0_12] : memref<10x128xf32, #tpu.memory_space<vmem>>, vector<1x128xf32>
    %c5 = arith.constant 5 : index
    %c0_13 = arith.constant 0 : index
    %8 = vector.load %arg4[%c5, %c0_13] : memref<10x128xf32, #tpu.memory_space<vmem>>, vector<1x128xf32>
    %c6 = arith.constant 6 : index
    %c0_14 = arith.constant 0 : index
    %9 = vector.load %arg4[%c6, %c0_14] : memref<10x128xf32, #tpu.memory_space<vmem>>, vector<1x128xf32>
    %c7 = arith.constant 7 : index
    %c0_15 = arith.constant 0 : index
    %10 = vector.load %arg4[%c7, %c0_15] : memref<10x128xf32, #tpu.memory_space<vmem>>, vector<1x128xf32>
    %c8 = arith.constant 8 : index
    %c0_16 = arith.constant 0 : index
    %11 = vector.load %arg4[%c8, %c0_16] : memref<10x128xf32, #tpu.memory_space<vmem>>, vector<1x128xf32>
    %c9 = arith.constant 9 : index
    %c0_17 = arith.constant 0 : index
    %12 = vector.load %arg4[%c9, %c0_17] : memref<10x128xf32, #tpu.memory_space<vmem>>, vector<1x128xf32>
    %13 = arith.truncf %0 : vector<1x128xf32> to vector<1x128xbf16>
    %c0_18 = arith.constant 0 : index
    %c0_19 = arith.constant 0 : index
    %14 = vector.load %arg3[%c0_18, %c0_19] : memref<128x1280xbf16, #tpu.memory_space<vmem>>, vector<128x512xbf16>
    %cst = arith.constant dense<0.000000e+00> : vector<1x512xf32>
    %15 = tpu.matmul %13, %14, %cst {dimension_numbers = #tpu.dot_dimension_numbers<[1], [0], [0], [1], [0, 0, 1, 1], [], []>} : vector<1x128xbf16>, vector<128x512xbf16>, vector<1x512xf32> -> vector<1x512xf32>
    %16 = vector.extract_strided_slice %15 {offsets = [0, 0], sizes = [1, 128], strides = [1, 1]} : vector<1x512xf32> to vector<1x128xf32>
    %17 = vector.shape_cast %16 : vector<1x128xf32> to vector<1x1x128xf32>
    %18 = vector.shape_cast %3 : vector<1x128xf32> to vector<1x1x128xf32>
    %19 = arith.addf %17, %18 : vector<1x1x128xf32>
    %20 = vector.extract_strided_slice %15 {offsets = [0, 128], sizes = [1, 128], strides = [1, 1]} : vector<1x512xf32> to vector<1x128xf32>
    %21 = vector.shape_cast %20 : vector<1x128xf32> to vector<1x1x128xf32>
    %22 = vector.shape_cast %4 : vector<1x128xf32> to vector<1x1x128xf32>
    %23 = arith.addf %21, %22 : vector<1x1x128xf32>
    %24 = vector.extract_strided_slice %15 {offsets = [0, 256], sizes = [1, 128], strides = [1, 1]} : vector<1x512xf32> to vector<1x128xf32>
    %25 = vector.extract_strided_slice %15 {offsets = [0, 384], sizes = [1, 128], strides = [1, 1]} : vector<1x512xf32> to vector<1x128xf32>
    %26 = arith.truncf %1 : vector<1x16x128xf32> to vector<1x16x128xbf16>
    %27 = vector.shape_cast %26 : vector<1x16x128xbf16> to vector<16x128xbf16>
    %c0_20 = arith.constant 0 : index
    %c1024 = arith.constant 1024 : index
    %28 = vector.load %arg3[%c0_20, %c1024] : memref<128x1280xbf16, #tpu.memory_space<vmem>>, vector<128x128xbf16>
    %cst_21 = arith.constant dense<0.000000e+00> : vector<16x128xf32>
    %29 = tpu.matmul %27, %28, %cst_21 {dimension_numbers = #tpu.dot_dimension_numbers<[1], [0], [0], [1], [0, 0, 1, 1], [], []>} : vector<16x128xbf16>, vector<128x128xbf16>, vector<16x128xf32> -> vector<16x128xf32>
    %30 = vector.shape_cast %29 : vector<16x128xf32> to vector<1x16x128xf32>
    %31 = arith.truncf %2 : vector<1x8x128xf32> to vector<1x8x128xbf16>
    %32 = vector.shape_cast %31 : vector<1x8x128xbf16> to vector<8x128xbf16>
    %c0_22 = arith.constant 0 : index
    %c1152 = arith.constant 1152 : index
    %33 = vector.load %arg3[%c0_22, %c1152] : memref<128x1280xbf16, #tpu.memory_space<vmem>>, vector<128x128xbf16>
    %cst_23 = arith.constant dense<0.000000e+00> : vector<8x128xf32>
    %34 = tpu.matmul %32, %33, %cst_23 {dimension_numbers = #tpu.dot_dimension_numbers<[1], [0], [0], [1], [0, 0, 1, 1], [], []>} : vector<8x128xbf16>, vector<128x128xbf16>, vector<8x128xf32> -> vector<8x128xf32>
    %35 = vector.shape_cast %34 : vector<8x128xf32> to vector<1x8x128xf32>
    %36 = vector.broadcast %19 : vector<1x1x128xf32> to vector<1x16x128xf32>
    %37 = arith.addf %30, %36 : vector<1x16x128xf32>
    %38 = math.tanh %37 : vector<1x16x128xf32>
    %39 = vector.broadcast %23 : vector<1x1x128xf32> to vector<1x8x128xf32>
    %40 = arith.addf %35, %39 : vector<1x8x128xf32>
    %41 = math.tanh %40 : vector<1x8x128xf32>
    %42 = vector.shape_cast %5 : vector<1x128xf32> to vector<1x1x128xf32>
    %43 = vector.broadcast %42 : vector<1x1x128xf32> to vector<1x16x128xf32>
    %44 = arith.mulf %38, %43 : vector<1x16x128xf32>
    %cst_24 = arith.constant dense<0.000000e+00> : vector<1x16xf32>
    %45 = vector.multi_reduction <add>, %44, %cst_24 [2] : vector<1x16x128xf32> to vector<1x16xf32>
    %46 = vector.shape_cast %45 : vector<1x16xf32> to vector<1x16x1xf32>
    %47 = vector.shape_cast %6 : vector<1x128xf32> to vector<1x1x128xf32>
    %48 = vector.broadcast %47 : vector<1x1x128xf32> to vector<1x8x128xf32>
    %49 = arith.mulf %41, %48 : vector<1x8x128xf32>
    %cst_25 = arith.constant dense<0.000000e+00> : vector<1x8xf32>
    %50 = vector.multi_reduction <add>, %49, %cst_25 [2] : vector<1x8x128xf32> to vector<1x8xf32>
    %51 = vector.shape_cast %50 : vector<1x8xf32> to vector<1x8x1xf32>
    %cst_26 = arith.constant dense<0xFF800000> : vector<1x1xf32>
    %52 = vector.multi_reduction <maximumf>, %46, %cst_26 [1] : vector<1x16x1xf32> to vector<1x1xf32>
    %53 = vector.shape_cast %52 : vector<1x1xf32> to vector<1x1x1xf32>
    %54 = vector.broadcast %53 : vector<1x1x1xf32> to vector<1x16x1xf32>
    %55 = arith.subf %46, %54 : vector<1x16x1xf32>
    %56 = math.exp %55 : vector<1x16x1xf32>
    %cst_27 = arith.constant dense<0.000000e+00> : vector<1x1xf32>
    %57 = vector.multi_reduction <add>, %56, %cst_27 [1] : vector<1x16x1xf32> to vector<1x1xf32>
    %58 = vector.shape_cast %57 : vector<1x1xf32> to vector<1x1x1xf32>
    %59 = tpu.reciprocal %58 {approx = true} : vector<1x1x1xf32> -> vector<1x1x1xf32>
    %60 = vector.broadcast %59 : vector<1x1x1xf32> to vector<1x16x1xf32>
    %61 = arith.mulf %56, %60 : vector<1x16x1xf32>
    %cst_28 = arith.constant dense<0xFF800000> : vector<1x1xf32>
    %62 = vector.multi_reduction <maximumf>, %51, %cst_28 [1] : vector<1x8x1xf32> to vector<1x1xf32>
    %63 = vector.shape_cast %62 : vector<1x1xf32> to vector<1x1x1xf32>
    %64 = vector.broadcast %63 : vector<1x1x1xf32> to vector<1x8x1xf32>
    %65 = arith.subf %51, %64 : vector<1x8x1xf32>
    %66 = math.exp %65 : vector<1x8x1xf32>
    %cst_29 = arith.constant dense<0.000000e+00> : vector<1x1xf32>
    %67 = vector.multi_reduction <add>, %66, %cst_29 [1] : vector<1x8x1xf32> to vector<1x1xf32>
    %68 = vector.shape_cast %67 : vector<1x1xf32> to vector<1x1x1xf32>
    %69 = tpu.reciprocal %68 {approx = true} : vector<1x1x1xf32> -> vector<1x1x1xf32>
    %70 = vector.broadcast %69 : vector<1x1x1xf32> to vector<1x8x1xf32>
    %71 = arith.mulf %66, %70 : vector<1x8x1xf32>
    %72 = vector.broadcast %61 : vector<1x16x1xf32> to vector<1x16x128xf32>
    %73 = arith.mulf %72, %1 : vector<1x16x128xf32>
    %cst_30 = arith.constant dense<0.000000e+00> : vector<1x128xf32>
    %74 = vector.multi_reduction <add>, %73, %cst_30 [1] : vector<1x16x128xf32> to vector<1x128xf32>
    %75 = vector.broadcast %71 : vector<1x8x1xf32> to vector<1x8x128xf32>
    %76 = arith.mulf %75, %2 : vector<1x8x128xf32>
    %cst_31 = arith.constant dense<0.000000e+00> : vector<1x128xf32>
    %77 = vector.multi_reduction <add>, %76, %cst_31 [1] : vector<1x8x128xf32> to vector<1x128xf32>
    %78 = arith.truncf %74 : vector<1x128xf32> to vector<1x128xbf16>
    %c0_32 = arith.constant 0 : index
    %c512 = arith.constant 512 : index
    %79 = vector.load %arg3[%c0_32, %c512] : memref<128x1280xbf16, #tpu.memory_space<vmem>>, vector<128x256xbf16>
    %cst_33 = arith.constant dense<0.000000e+00> : vector<1x256xf32>
    %80 = tpu.matmul %78, %79, %cst_33 {dimension_numbers = #tpu.dot_dimension_numbers<[1], [0], [0], [1], [0, 0, 1, 1], [], []>} : vector<1x128xbf16>, vector<128x256xbf16>, vector<1x256xf32> -> vector<1x256xf32>
    %81 = arith.truncf %77 : vector<1x128xf32> to vector<1x128xbf16>
    %c0_34 = arith.constant 0 : index
    %c768 = arith.constant 768 : index
    %82 = vector.load %arg3[%c0_34, %c768] : memref<128x1280xbf16, #tpu.memory_space<vmem>>, vector<128x256xbf16>
    %cst_35 = arith.constant dense<0.000000e+00> : vector<1x256xf32>
    %83 = tpu.matmul %81, %82, %cst_35 {dimension_numbers = #tpu.dot_dimension_numbers<[1], [0], [0], [1], [0, 0, 1, 1], [], []>} : vector<1x128xbf16>, vector<128x256xbf16>, vector<1x256xf32> -> vector<1x256xf32>
    %84 = vector.extract_strided_slice %80 {offsets = [0, 0], sizes = [1, 128], strides = [1, 1]} : vector<1x256xf32> to vector<1x128xf32>
    %85 = arith.addf %84, %8 : vector<1x128xf32>
    %86 = vector.extract_strided_slice %83 {offsets = [0, 0], sizes = [1, 128], strides = [1, 1]} : vector<1x256xf32> to vector<1x128xf32>
    %87 = arith.addf %86, %9 : vector<1x128xf32>
    %88 = vector.extract_strided_slice %80 {offsets = [0, 128], sizes = [1, 128], strides = [1, 1]} : vector<1x256xf32> to vector<1x128xf32>
    %89 = arith.addf %88, %10 : vector<1x128xf32>
    %90 = arith.addf %89, %25 : vector<1x128xf32>
    %91 = vector.extract_strided_slice %83 {offsets = [0, 128], sizes = [1, 128], strides = [1, 1]} : vector<1x256xf32> to vector<1x128xf32>
    %92 = arith.addf %91, %11 : vector<1x128xf32>
    %93 = arith.addf %92, %25 : vector<1x128xf32>
    %94 = math.tanh %90 : vector<1x128xf32>
    %95 = arith.mulf %94, %12 : vector<1x128xf32>
    %cst_36 = arith.constant dense<0.000000e+00> : vector<1xf32>
    %96 = vector.multi_reduction <add>, %95, %cst_36 [1] : vector<1x128xf32> to vector<1xf32>
    %97 = vector.shape_cast %96 : vector<1xf32> to vector<1x1xf32>
    %98 = math.tanh %93 : vector<1x128xf32>
    %99 = arith.mulf %98, %12 : vector<1x128xf32>
    %cst_37 = arith.constant dense<0.000000e+00> : vector<1xf32>
    %100 = vector.multi_reduction <add>, %99, %cst_37 [1] : vector<1x128xf32> to vector<1xf32>
    %101 = vector.shape_cast %100 : vector<1xf32> to vector<1x1xf32>
    %cst_38 = arith.constant dense<0xFF800000> : vector<1xf32>
    %102 = vector.multi_reduction <maximumf>, %97, %cst_38 [0] : vector<1x1xf32> to vector<1xf32>
    %103 = vector.shape_cast %102 : vector<1xf32> to vector<1x1xf32>
    %cst_39 = arith.constant dense<0xFF800000> : vector<1xf32>
    %104 = vector.multi_reduction <maximumf>, %101, %cst_39 [0] : vector<1x1xf32> to vector<1xf32>
    %105 = vector.shape_cast %104 : vector<1xf32> to vector<1x1xf32>
    %106 = arith.maximumf %103, %105 : vector<1x1xf32>
    %107 = arith.subf %97, %106 : vector<1x1xf32>
    %108 = math.exp %107 : vector<1x1xf32>
    %109 = arith.subf %101, %106 : vector<1x1xf32>
    %110 = math.exp %109 : vector<1x1xf32>
    %cst_40 = arith.constant dense<0.000000e+00> : vector<1xf32>
    %111 = vector.multi_reduction <add>, %108, %cst_40 [0] : vector<1x1xf32> to vector<1xf32>
    %112 = vector.shape_cast %111 : vector<1xf32> to vector<1x1xf32>
    %cst_41 = arith.constant dense<0.000000e+00> : vector<1xf32>
    %113 = vector.multi_reduction <add>, %110, %cst_41 [0] : vector<1x1xf32> to vector<1xf32>
    %114 = vector.shape_cast %113 : vector<1xf32> to vector<1x1xf32>
    %115 = arith.addf %112, %114 : vector<1x1xf32>
    %116 = tpu.reciprocal %115 {approx = true} : vector<1x1xf32> -> vector<1x1xf32>
    %117 = vector.extract %116[0, 0] : f32 from vector<1x1xf32>
    %118 = vector.extract %108[0, 0] : f32 from vector<1x1xf32>
    %119 = arith.mulf %118, %117 : f32
    %120 = vector.extract %110[0, 0] : f32 from vector<1x1xf32>
    %121 = arith.mulf %120, %117 : f32
    %122 = vector.broadcast %119 : f32 to vector<1x128xf32>
    %123 = arith.mulf %122, %85 : vector<1x128xf32>
    %124 = arith.addf %24, %123 : vector<1x128xf32>
    %125 = vector.broadcast %121 : f32 to vector<1x128xf32>
    %126 = arith.mulf %125, %87 : vector<1x128xf32>
    %127 = arith.addf %124, %126 : vector<1x128xf32>
    %128 = arith.addf %127, %7 : vector<1x128xf32>
    %129 = math.tanh %128 : vector<1x128xf32>
    %c0_42 = arith.constant 0 : index
    %c0_43 = arith.constant 0 : index
    %130 = vector.load %arg5[%c0_42, %c0_43] : memref<1x128xf32, #tpu.memory_space<vmem>>, vector<1x128xf32>
    tpu.vector_store %arg5[%c0_42, %c0_43], %129 {strides = array<i32>} : memref<1x128xf32, #tpu.memory_space<vmem>>, vector<1x128xf32>,
    return
  }
}

</mosaic_0001>

<llo_original>
// kernel: tpu_custom_call.1
$region0: #{tpu_custom_call.1}
  #allocation0 [shape = 'u32[]', space=smem, size = 0x4, offset = 0x4, fixed_abs, tag = 'smem constant byte address 0x4 - core index']
  #allocation1 [shape = 'u32[72,128]{1,0:T(1,128)}', space=vmem, size = 0x9000, scoped, tag = 'internal scratch']
  %s0 = inlined_call_operand.hbm [shape: f32[1,128], index: 0, kind: input, shape index: {}]
  %s1 = inlined_call_operand.hbm [shape: f32[1,16,128], index: 1, kind: input, shape index: {}]
  %s2 = inlined_call_operand.hbm [shape: f32[1,8,128], index: 2, kind: input, shape index: {}]
  %s3 = inlined_call_operand.hbm [shape: bf16[128,1280], index: 3, kind: input, shape index: {}]
  %s4 = inlined_call_operand.hbm [shape: f32[10,128], index: 4, kind: input, shape index: {}]
  %s5 = inlined_call_operand.hbm [shape: f32[1,128], index: 5, kind: output, shape index: {}]
  %s6 = sld [smem:[#allocation0]]
  $region50: #{tpu_custom_call.1} parent=0
    _
  %s8 = ssub.s32 1, %s6
  %s9 = scalar_select 0, %s8, %s6
  $region1: #{tpu_custom_call.1} parent=0
    #allocation2 [shape = 'u8[512]{0}', space=vmem, size = 0x400, scoped, tag = 'input window, operand 0, single buffered']
    #allocation3 [shape = 's32[1]{0}', space=sflag, size = 0x4, scoped, tag = 'scoped memory for tpu_custom_call.1']
    #allocation4 [shape = 's32[1]{0}', space=sflag, size = 0x4, scoped, tag = 'scoped memory for tpu_custom_call.1']
    #allocation5 [shape = 'u8[8192]{0}', space=vmem, size = 0x2000, scoped, tag = 'input window, operand 1, single buffered']
    #allocation6 [shape = 's32[1]{0}', space=sflag, size = 0x4, scoped, tag = 'scoped memory for tpu_custom_call.1']
    #allocation7 [shape = 'u8[4096]{0}', space=vmem, size = 0x1000, scoped, tag = 'input window, operand 2, single buffered']
    #allocation8 [shape = 'u8[327680]{0}', space=vmem, size = 0x50000, scoped, tag = 'input window, operand 3, single buffered']
    #allocation9 [shape = 's32[1]{0}', space=sflag, size = 0x4, scoped, tag = 'scoped memory for tpu_custom_call.1']
    #allocation10 [shape = 'u8[8192]{0}', space=vmem, size = 0x2000, scoped, tag = 'input window, operand 4, single buffered']
    #allocation11 [shape = 'u8[512]{0}', space=vmem, size = 0x400, scoped, tag = 'output window, operand 0, single buffered']
    %10 = vsyncpa [#allocation3], 0
    %11 = vsyncpa [#allocation6], 0
    %12 = vsyncpa [#allocation9], 0
    %13 = vsyncpa [#allocation4], 0
    // Predicated region
    $region2: #{tpu_custom_call.1} parent=1 // pred_check
      _
    $region3: #{tpu_custom_call.1} parent=1 // pred_check_branch
      %15 = sbr.rel (0) target = $region5
    $region4: #{tpu_custom_call.1} parent=1 // pred_region
      %17 = vsyncadd [#allocation3], 0
      %s19 = sshll.u32 %s0, 4
      %s20 = int_to_ptr.hbm [resolvable:$true] %s19
      %s21 = sshll.u32 [#allocation2], 4
      %s22 = int_to_ptr.vmem [resolvable:$true] %s21
      %24 = dma.hbm_to_vmem [thread:$0]  %s20, 16, %s22, [#allocation3]
    $region5: #{tpu_custom_call.1} parent=1 // pred_fallthru
      _
    // Predicated region
    $region6: #{tpu_custom_call.1} parent=1 // pred_check
      _
    $region7: #{tpu_custom_call.1} parent=1 // pred_check_branch
      %26 = sbr.rel (0) target = $region9
    $region8: #{tpu_custom_call.1} parent=1 // pred_region
      %28 = vsyncadd [#allocation6], 0
      %s29 = sshll.u32 %s1, 4
      %s30 = int_to_ptr.hbm [resolvable:$true] %s29
      %s31 = sshll.u32 [#allocation5], 4
      %s32 = int_to_ptr.vmem [resolvable:$true] %s31
      %37 = dma.hbm_to_vmem [thread:$0]  %s30, 256, %s32, [#allocation6], 128, 128, 8
    $region9: #{tpu_custom_call.1} parent=1 // pred_fallthru
      _
    // Predicated region
    $region10: #{tpu_custom_call.1} parent=1 // pred_check
      _
    $region11: #{tpu_custom_call.1} parent=1 // pred_check_branch
      %39 = sbr.rel (0) target = $region13
    $region12: #{tpu_custom_call.1} parent=1 // pred_region
      %41 = vsyncadd [#allocation6], 0
      %s43 = sshll.u32 %s2, 4
      %s44 = int_to_ptr.hbm [resolvable:$true] %s43
      %s45 = sshll.u32 [#allocation7], 4
      %s46 = int_to_ptr.vmem [resolvable:$true] %s45
      %48 = dma.hbm_to_vmem [thread:$0]  %s44, 128, %s46, [#allocation6]
    $region13: #{tpu_custom_call.1} parent=1 // pred_fallthru
      _
    // Predicated region
    $region14: #{tpu_custom_call.1} parent=1 // pred_check
      _
    $region15: #{tpu_custom_call.1} parent=1 // pred_check_branch
      %50 = sbr.rel (0) target = $region17
    $region16: #{tpu_custom_call.1} parent=1 // pred_region
      %52 = vsyncadd [#allocation9], 0
      %s53 = sshll.u32 %s3, 4
      %s54 = int_to_ptr.hbm [resolvable:$true] %s53
      %s55 = sshll.u32 [#allocation8], 4
      %s56 = int_to_ptr.vmem [resolvable:$true] %s55
      %61 = dma.hbm_to_vmem [thread:$0]  %s54, 10240, %s56, [#allocation9], 640, 640, 40
    $region17: #{tpu_custom_call.1} parent=1 // pred_fallthru
      _
    // Predicated region
    $region18: #{tpu_custom_call.1} parent=1 // pred_check
      _
    $region19: #{tpu_custom_call.1} parent=1 // pred_check_branch
      %63 = sbr.rel (0) target = $region21
    $region20: #{tpu_custom_call.1} parent=1 // pred_region
      %65 = vsyncadd [#allocation9], 0
      %s66 = sshll.u32 %s4, 4
      %s67 = int_to_ptr.hbm [resolvable:$true] %s66
      %s68 = sshll.u32 [#allocation10], 4
      %s69 = int_to_ptr.vmem [resolvable:$true] %s68
      %74 = dma.hbm_to_vmem [thread:$0]  %s67, 256, %s69, [#allocation9], 128, 128, 8
    $region21: #{tpu_custom_call.1} parent=1 // pred_fallthru
      _
    // Predicated region
    $region22: #{tpu_custom_call.1} parent=1 // pred_check
      _
    $region23: #{tpu_custom_call.1} parent=1 // pred_check_branch
      %76 = sbr.rel (0) target = $region25
    $region24: #{tpu_custom_call.1} parent=1 // pred_region
      %78 = dma.done [#allocation3], 16
    $region25: #{tpu_custom_call.1} parent=1 // pred_fallthru
      _
    // Predicated region
    $region26: #{tpu_custom_call.1} parent=1 // pred_check
      _
    $region27: #{tpu_custom_call.1} parent=1 // pred_check_branch
      %80 = sbr.rel (0) target = $region29
    $region28: #{tpu_custom_call.1} parent=1 // pred_region
      %82 = dma.done [#allocation6], 256
    $region29: #{tpu_custom_call.1} parent=1 // pred_fallthru
      _
    // Predicated region
    $region30: #{tpu_custom_call.1} parent=1 // pred_check
      _
    $region31: #{tpu_custom_call.1} parent=1 // pred_check_branch
      %84 = sbr.rel (0) target = $region33
    $region32: #{tpu_custom_call.1} parent=1 // pred_region
      %86 = dma.done [#allocation6], 128
    $region33: #{tpu_custom_call.1} parent=1 // pred_fallthru
      _
    // Predicated region
    $region34: #{tpu_custom_call.1} parent=1 // pred_check
      _
    $region35: #{tpu_custom_call.1} parent=1 // pred_check_branch
      %88 = sbr.rel (0) target = $region37
    $region36: #{tpu_custom_call.1} parent=1 // pred_region
      %90 = dma.done [#allocation9], 10240
    $region37: #{tpu_custom_call.1} parent=1 // pred_fallthru
      _
    // Predicated region
    $region38: #{tpu_custom_call.1} parent=1 // pred_check
      _
    $region39: #{tpu_custom_call.1} parent=1 // pred_check_branch
      %92 = sbr.rel (0) target = $region41
    $region40: #{tpu_custom_call.1} parent=1 // pred_region
      %94 = dma.done [#allocation9], 256
    $region41: #{tpu_custom_call.1} parent=1 // pred_fallthru
      _
    %v95 = vld [vmem:[#allocation2] sm:$0x1]
    %v96 = vld [vmem:[#allocation5] sm:$0xff]
    %v97 = vld [vmem:[#allocation5 + $0x8] sm:$0xff]
    %v98 = vld [vmem:[#allocation7] sm:$0xff]
    %v99 = vld [vmem:[#allocation10] sm:$0x1]
    %v100 = vld [vmem:[#allocation10 + $0x1] sm:$0x1]
    %v101 = vld [vmem:[#allocation10 + $0x2] sm:$0x1]
    %v102 = vld [vmem:[#allocation10 + $0x3] sm:$0x1]
    %v103 = vld [vmem:[#allocation10 + $0x4] sm:$0x1]
    %v104 = vld [vmem:[#allocation10 + $0x5] sm:$0x1]
    %v105 = vld [vmem:[#allocation10 + $0x6] sm:$0x1]
    %v106 = vld [vmem:[#allocation10 + $0x7] sm:$0x1]
    %v107 = vld [vmem:[#allocation10 + $0x8] sm:$0x1]
    %v108 = vld [vmem:[#allocation10 + $0x9] sm:$0x1]
    %v109 = vpack.c.bf16 %v95, %v95
    %v110 = vld [vmem:[#allocation8] sm:$0xff]
    %v111 = vld [vmem:[#allocation8 + $0x8] sm:$0xff]
    %v112 = vld [vmem:[#allocation8 + $0x28] sm:$0xff]
    %v113 = vld [vmem:[#allocation8 + $0x30] sm:$0xff]
    %v114 = vld [vmem:[#allocation8 + $0x50] sm:$0xff]
    %v115 = vld [vmem:[#allocation8 + $0x58] sm:$0xff]
    %v116 = vld [vmem:[#allocation8 + $0x78] sm:$0xff]
    %v117 = vld [vmem:[#allocation8 + $0x80] sm:$0xff]
    %v118 = vld [vmem:[#allocation8 + $0xa0] sm:$0xff]
    %v119 = vld [vmem:[#allocation8 + $0xa8] sm:$0xff]
    %v120 = vld [vmem:[#allocation8 + $0xc8] sm:$0xff]
    %v121 = vld [vmem:[#allocation8 + $0xd0] sm:$0xff]
    %v122 = vld [vmem:[#allocation8 + $0xf0] sm:$0xff]
    %v123 = vld [vmem:[#allocation8 + $0xf8] sm:$0xff]
    %v124 = vld [vmem:[#allocation8 + $0x118] sm:$0xff]
    %v125 = vld [vmem:[#allocation8 + $0x120] sm:$0xff]
    %v126 = vld [vmem:[#allocation8 + $0x140] sm:$0xff]
    %v127 = vld [vmem:[#allocation8 + $0x148] sm:$0xff]
    %v128 = vld [vmem:[#allocation8 + $0x168] sm:$0xff]
    %v129 = vld [vmem:[#allocation8 + $0x170] sm:$0xff]
    %v130 = vld [vmem:[#allocation8 + $0x190] sm:$0xff]
    %v131 = vld [vmem:[#allocation8 + $0x198] sm:$0xff]
    %v132 = vld [vmem:[#allocation8 + $0x1b8] sm:$0xff]
    %v133 = vld [vmem:[#allocation8 + $0x1c0] sm:$0xff]
    %v134 = vld [vmem:[#allocation8 + $0x1e0] sm:$0xff]
    %v135 = vld [vmem:[#allocation8 + $0x1e8] sm:$0xff]
    %v136 = vld [vmem:[#allocation8 + $0x208] sm:$0xff]
    %v137 = vld [vmem:[#allocation8 + $0x210] sm:$0xff]
    %v138 = vld [vmem:[#allocation8 + $0x230] sm:$0xff]
    %v139 = vld [vmem:[#allocation8 + $0x238] sm:$0xff]
    %v140 = vld [vmem:[#allocation8 + $0x258] sm:$0xff]
    %v141 = vld [vmem:[#allocation8 + $0x260] sm:$0xff]
    %v174 = vunpack.c.l.b16 %v110
    %v175 = vunpack.c.h.b16 %v110
    %v176 = vunpack.c.l.b16 %v111
    %v177 = vunpack.c.h.b16 %v111
    %v178 = vunpack.c.l.b16 %v112
    %v179 = vunpack.c.h.b16 %v112
    %v180 = vunpack.c.l.b16 %v113
    %v181 = vunpack.c.h.b16 %v113
    %v182 = vunpack.c.l.b16 %v114
    %v183 = vunpack.c.h.b16 %v114
    %v184 = vunpack.c.l.b16 %v115
    %v185 = vunpack.c.h.b16 %v115
    %v186 = vunpack.c.l.b16 %v116
    %v187 = vunpack.c.h.b16 %v116
    %v188 = vunpack.c.l.b16 %v117
    %v189 = vunpack.c.h.b16 %v117
    %v190 = vunpack.c.l.b16 %v118
    %v191 = vunpack.c.h.b16 %v118
    %v192 = vunpack.c.l.b16 %v119
    %v193 = vunpack.c.h.b16 %v119
    %v194 = vunpack.c.l.b16 %v120
    %v195 = vunpack.c.h.b16 %v120
    %v196 = vunpack.c.l.b16 %v121
    %v197 = vunpack.c.h.b16 %v121
    %v198 = vunpack.c.l.b16 %v122
    %v199 = vunpack.c.h.b16 %v122
    %v200 = vunpack.c.l.b16 %v123
    %v201 = vunpack.c.h.b16 %v123
    %v202 = vunpack.c.l.b16 %v124
    %v203 = vunpack.c.h.b16 %v124
    %v204 = vunpack.c.l.b16 %v125
    %v205 = vunpack.c.h.b16 %v125
    %v206 = vunpack.c.l.b16 %v126
    %v207 = vunpack.c.h.b16 %v126
    %v208 = vunpack.c.l.b16 %v127
    %v209 = vunpack.c.h.b16 %v127
    %v210 = vunpack.c.l.b16 %v128
    %v211 = vunpack.c.h.b16 %v128
    %v212 = vunpack.c.l.b16 %v129
    %v213 = vunpack.c.h.b16 %v129
    %v214 = vunpack.c.l.b16 %v130
    %v215 = vunpack.c.h.b16 %v130
    %v216 = vunpack.c.l.b16 %v131
    %v217 = vunpack.c.h.b16 %v131
    %v218 = vunpack.c.l.b16 %v132
    %v219 = vunpack.c.h.b16 %v132
    %v220 = vunpack.c.l.b16 %v133
    %v221 = vunpack.c.h.b16 %v133
    %v222 = vunpack.c.l.b16 %v134
    %v223 = vunpack.c.h.b16 %v134
    %v224 = vunpack.c.l.b16 %v135
    %v225 = vunpack.c.h.b16 %v135
    %v226 = vunpack.c.l.b16 %v136
    %v227 = vunpack.c.h.b16 %v136
    %v228 = vunpack.c.l.b16 %v137
    %v229 = vunpack.c.h.b16 %v137
    %v230 = vunpack.c.l.b16 %v138
    %v231 = vunpack.c.h.b16 %v138
    %v232 = vunpack.c.l.b16 %v139
    %v233 = vunpack.c.h.b16 %v139
    %v234 = vunpack.c.l.b16 %v140
    %v235 = vunpack.c.h.b16 %v140
    %v236 = vunpack.c.l.b16 %v141
    %v237 = vunpack.c.h.b16 %v141
    %v238 = vpack.c.b16 %v178, %v174
    %v239 = vpack.c.b16 %v179, %v175
    %v240 = vpack.c.b16 %v180, %v176
    %v241 = vpack.c.b16 %v181, %v177
    %v242 = vpack.c.b16 %v186, %v182
    %v243 = vpack.c.b16 %v187, %v183
    %v244 = vpack.c.b16 %v188, %v184
    %v245 = vpack.c.b16 %v189, %v185
    %v246 = vpack.c.b16 %v194, %v190
    %v247 = vpack.c.b16 %v195, %v191
    %v248 = vpack.c.b16 %v196, %v192
    %v249 = vpack.c.b16 %v197, %v193
    %v250 = vpack.c.b16 %v202, %v198
    %v251 = vpack.c.b16 %v203, %v199
    %v252 = vpack.c.b16 %v204, %v200
    %v253 = vpack.c.b16 %v205, %v201
    %v254 = vpack.c.b16 %v210, %v206
    %v255 = vpack.c.b16 %v211, %v207
    %v256 = vpack.c.b16 %v212, %v208
    %v257 = vpack.c.b16 %v213, %v209
    %v258 = vpack.c.b16 %v218, %v214
    %v259 = vpack.c.b16 %v219, %v215
    %v260 = vpack.c.b16 %v220, %v216
    %v261 = vpack.c.b16 %v221, %v217
    %v262 = vpack.c.b16 %v226, %v222
    %v263 = vpack.c.b16 %v227, %v223
    %v264 = vpack.c.b16 %v228, %v224
    %v265 = vpack.c.b16 %v229, %v225
    %v266 = vpack.c.b16 %v234, %v230
    %v267 = vpack.c.b16 %v235, %v231
    %v268 = vpack.c.b16 %v236, %v232
    %v269 = vpack.c.b16 %v237, %v233
    %302 = vmatpush.bf16.msra.mxu0 %v266
    %303 = vmatpush.bf16.msra.mxu0 %v262
    %304 = vmatpush.bf16.msra.mxu0 %v258
    %305 = vmatpush.bf16.msra.mxu0 %v254
    %306 = vmatpush.bf16.msra.mxu0 %v250
    %307 = vmatpush.bf16.msra.mxu0 %v246
    %308 = vmatpush.bf16.msra.mxu0 %v242
    %309 = vmatpush.bf16.msra.mxu0 %v238
    %310 = vmatmul.bf16.gmra.mxu0 %v109
    %v311 = vpop.f32.mrf.mxu0
    %v312 = vadd.f32 0.0, %v311
    %v313 = vpop.f32.mrf.mxu0
    %314 = vdwg.mxu0
    %315 = vmatpush.bf16.msra.mxu0 %v267
    %316 = vmatpush.bf16.msra.mxu0 %v263
    %317 = vmatpush.bf16.msra.mxu0 %v259
    %318 = vmatpush.bf16.msra.mxu0 %v255
    %319 = vmatpush.bf16.msra.mxu0 %v251
    %320 = vmatpush.bf16.msra.mxu0 %v247
    %321 = vmatpush.bf16.msra.mxu0 %v243
    %322 = vmatpush.bf16.msra.mxu0 %v239
    %323 = vmatmul.bf16.gmra.mxu0 %v109
    %v324 = vpop.f32.mrf.mxu0
    %v325 = vadd.f32 0.0, %v324
    %v326 = vpop.f32.mrf.mxu0
    %327 = vdwg.mxu0
    %328 = vmatpush.bf16.msra.mxu0 %v268
    %329 = vmatpush.bf16.msra.mxu0 %v264
    %330 = vmatpush.bf16.msra.mxu0 %v260
    %331 = vmatpush.bf16.msra.mxu0 %v256
    %332 = vmatpush.bf16.msra.mxu0 %v252
    %333 = vmatpush.bf16.msra.mxu0 %v248
    %334 = vmatpush.bf16.msra.mxu0 %v244
    %335 = vmatpush.bf16.msra.mxu0 %v240
    %336 = vmatmul.bf16.gmra.mxu0 %v109
    %v337 = vpop.f32.mrf.mxu0
    %v338 = vadd.f32 0.0, %v337
    %v339 = vpop.f32.mrf.mxu0
    %340 = vdwg.mxu0
    %341 = vmatpush.bf16.msra.mxu0 %v269
    %342 = vmatpush.bf16.msra.mxu0 %v265
    %343 = vmatpush.bf16.msra.mxu0 %v261
    %344 = vmatpush.bf16.msra.mxu0 %v257
    %345 = vmatpush.bf16.msra.mxu0 %v253
    %346 = vmatpush.bf16.msra.mxu0 %v249
    %347 = vmatpush.bf16.msra.mxu0 %v245
    %348 = vmatpush.bf16.msra.mxu0 %v241
    %349 = vmatmul.bf16.gmra.mxu0 %v109
    %v350 = vpop.f32.mrf.mxu0
    %v351 = vadd.f32 0.0, %v350
    %v352 = vpop.f32.mrf.mxu0
    %353 = vdwg.mxu0
    %v354 = vadd.f32 %v312, %v99
    %v355 = vadd.f32 %v325, %v100
    %v356 = vpack.c.bf16 %v96, %v96
    %v357 = vpack.c.bf16 %v97, %v97
    %v358 = vld [vmem:[#allocation8 + $0x20] sm:$0xf]
    %v359 = vld [vmem:[#allocation8 + $0x48] sm:$0xf]
    %v360 = vld [vmem:[#allocation8 + $0x70] sm:$0xf]
    %v361 = vld [vmem:[#allocation8 + $0x98] sm:$0xf]
    %v362 = vld [vmem:[#allocation8 + $0xc0] sm:$0xf]
    %v363 = vld [vmem:[#allocation8 + $0xe8] sm:$0xf]
    %v364 = vld [vmem:[#allocation8 + $0x110] sm:$0xf]
    %v365 = vld [vmem:[#allocation8 + $0x138] sm:$0xf]
    %v366 = vld [vmem:[#allocation8 + $0x160] sm:$0xf]
    %v367 = vld [vmem:[#allocation8 + $0x188] sm:$0xf]
    %v368 = vld [vmem:[#allocation8 + $0x1b0] sm:$0xf]
    %v369 = vld [vmem:[#allocation8 + $0x1d8] sm:$0xf]
    %v370 = vld [vmem:[#allocation8 + $0x200] sm:$0xf]
    %v371 = vld [vmem:[#allocation8 + $0x228] sm:$0xf]
    %v372 = vld [vmem:[#allocation8 + $0x250] sm:$0xf]
    %v373 = vld [vmem:[#allocation8 + $0x278] sm:$0xf]
    %v376 = vunpack.c.l.b16 %v356
    %v377 = vunpack.c.l.b16 %v357
    %v378 = vpack.c.b16 %v377, %v376
    %v396 = vunpack.c.l.b16 %v358
    %v397 = vunpack.c.l.b16 %v359
    %v398 = vunpack.c.l.b16 %v360
    %v399 = vunpack.c.l.b16 %v361
    %v400 = vunpack.c.l.b16 %v362
    %v401 = vunpack.c.l.b16 %v363
    %v402 = vunpack.c.l.b16 %v364
    %v403 = vunpack.c.l.b16 %v365
    %v404 = vunpack.c.l.b16 %v366
    %v405 = vunpack.c.l.b16 %v367
    %v406 = vunpack.c.l.b16 %v368
    %v407 = vunpack.c.l.b16 %v369
    %v408 = vunpack.c.l.b16 %v370
    %v409 = vunpack.c.l.b16 %v371
    %v410 = vunpack.c.l.b16 %v372
    %v411 = vunpack.c.l.b16 %v373
    %v412 = vpack.c.b16 %v397, %v396
    %v413 = vpack.c.b16 %v399, %v398
    %v414 = vpack.c.b16 %v401, %v400
    %v415 = vpack.c.b16 %v403, %v402
    %v416 = vpack.c.b16 %v405, %v404
    %v417 = vpack.c.b16 %v407, %v406
    %v418 = vpack.c.b16 %v409, %v408
    %v419 = vpack.c.b16 %v411, %v410
    %428 = vmatpush.bf16.msra.mxu0 %v419
    %429 = vmatpush.bf16.msra.mxu0 %v418
    %430 = vmatpush.bf16.msra.mxu0 %v417
    %431 = vmatpush.bf16.msra.mxu0 %v416
    %432 = vmatpush.bf16.msra.mxu0 %v415
    %433 = vmatpush.bf16.msra.mxu0 %v414
    %434 = vmatpush.bf16.msra.mxu0 %v413
    %435 = vmatpush.bf16.msra.mxu0 %v412
    %436 = vmatmul.bf16.gmra.mxu0 %v378
    %v437 = vpop.f32.mrf.mxu0
    %v438 = vadd.f32 0.0, %v437
    %v439 = vpop.f32.mrf.mxu0
    %v440 = vadd.f32 0.0, %v439
    %441 = vdwg.mxu0
    %v442 = vpack.c.bf16 %v98, %v98
    %v443 = vld [vmem:[#allocation8 + $0x24] sm:$0xf]
    %v444 = vld [vmem:[#allocation8 + $0x4c] sm:$0xf]
    %v445 = vld [vmem:[#allocation8 + $0x74] sm:$0xf]
    %v446 = vld [vmem:[#allocation8 + $0x9c] sm:$0xf]
    %v447 = vld [vmem:[#allocation8 + $0xc4] sm:$0xf]
    %v448 = vld [vmem:[#allocation8 + $0xec] sm:$0xf]
    %v449 = vld [vmem:[#allocation8 + $0x114] sm:$0xf]
    %v450 = vld [vmem:[#allocation8 + $0x13c] sm:$0xf]
    %v451 = vld [vmem:[#allocation8 + $0x164] sm:$0xf]
    %v452 = vld [vmem:[#allocation8 + $0x18c] sm:$0xf]
    %v453 = vld [vmem:[#allocation8 + $0x1b4] sm:$0xf]
    %v454 = vld [vmem:[#allocation8 + $0x1dc] sm:$0xf]
    %v455 = vld [vmem:[#allocation8 + $0x204] sm:$0xf]
    %v456 = vld [vmem:[#allocation8 + $0x22c] sm:$0xf]
    %v457 = vld [vmem:[#allocation8 + $0x254] sm:$0xf]
    %v458 = vld [vmem:[#allocation8 + $0x27c] sm:$0xf]
    %v475 = vunpack.c.l.b16 %v443
    %v476 = vunpack.c.l.b16 %v444
    %v477 = vunpack.c.l.b16 %v445
    %v478 = vunpack.c.l.b16 %v446
    %v479 = vunpack.c.l.b16 %v447
    %v480 = vunpack.c.l.b16 %v448
    %v481 = vunpack.c.l.b16 %v449
    %v482 = vunpack.c.l.b16 %v450
    %v483 = vunpack.c.l.b16 %v451
    %v484 = vunpack.c.l.b16 %v452
    %v485 = vunpack.c.l.b16 %v453
    %v486 = vunpack.c.l.b16 %v454
    %v487 = vunpack.c.l.b16 %v455
    %v488 = vunpack.c.l.b16 %v456
    %v489 = vunpack.c.l.b16 %v457
    %v490 = vunpack.c.l.b16 %v458
    %v491 = vpack.c.b16 %v476, %v475
    %v492 = vpack.c.b16 %v478, %v477
    %v493 = vpack.c.b16 %v480, %v479
    %v494 = vpack.c.b16 %v482, %v481
    %v495 = vpack.c.b16 %v484, %v483
    %v496 = vpack.c.b16 %v486, %v485
    %v497 = vpack.c.b16 %v488, %v487
    %v498 = vpack.c.b16 %v490, %v489
    %507 = vmatpush.bf16.msra.mxu0 %v498
    %508 = vmatpush.bf16.msra.mxu0 %v497
    %509 = vmatpush.bf16.msra.mxu0 %v496
    %510 = vmatpush.bf16.msra.mxu0 %v495
    %511 = vmatpush.bf16.msra.mxu0 %v494
    %512 = vmatpush.bf16.msra.mxu0 %v493
    %513 = vmatpush.bf16.msra.mxu0 %v492
    %514 = vmatpush.bf16.msra.mxu0 %v491
    %515 = vmatmul.bf16.gmra.mxu0 %v442
    %v516 = vpop.f32.mrf.mxu0
    %v517 = vadd.f32 0.0, %v516
    %v518 = vpop.f32.mrf.mxu0
    %519 = vdwg.mxu0
    %v520 = vperm.slane %v354, 0
    %v521 = vadd.f32 %v438, %v520
    %v522 = vadd.f32 %v440, %v520
    %v523 = vtanh.pop %v521
    %v524 = vtanh.pop %v522
    %v525 = vperm.slane %v355, 0
    %v526 = vadd.f32 %v517, %v525
    %v527 = vtanh.pop %v526
    %v528 = vperm.slane %v101, 0
    %v529 = vmul.f32 %v523, %v528
    %v530 = vmul.f32 %v524, %v528
    %531 = vadd.xlane.f32.xlu0 %v529
    %v532 = vpop.xlane.xlu0 %531
    %533 = vadd.xlane.f32.xlu0 %v530
    %v534 = vpop.xlane.xlu0 %533
    %v535 = vperm.slane %v102, 0
    %v536 = vmul.f32 %v527, %v535
    %537 = vadd.xlane.f32.xlu0 %v536
    %v538 = vpop.xlane.xlu0 %537
    %v539 = vmax.f32 %v532, %v534
    %v540 = vrot.slane %v539, 4
    %v541 = vmax.f32 %v539, %v540
    %v542 = vrot.slane %v541, 2
    %v543 = vmax.f32 %v541, %v542
    %v544 = vrot.slane %v543, 1
    %v545 = vmax.f32 %v543, %v544
    %v546 = vsub.f32 %v532, %v545
    %v547 = vsub.f32 %v534, %v545
    %v548 = vmul.f32 %v546, 1.442695
    %v549 = vpow.pop %v548
    %v550 = vmul.f32 %v547, 1.442695
    %v551 = vpow.pop %v550
    %v552 = vadd.f32 %v549, %v551
    %v553 = vrot.slane %v552, 4
    %v554 = vadd.f32 %v552, %v553
    %v555 = vrot.slane %v554, 2
    %v556 = vadd.f32 %v554, %v555
    %v557 = vrot.slane %v556, 1
    %v558 = vadd.f32 %v556, %v557
    %v559 = vrcp.pop %v558
    %v560 = vmul.f32 %v549, %v559
    %v561 = vmul.f32 %v551, %v559
    %v562 = vrot.slane %v538, 4
    %v563 = vmax.f32 %v538, %v562
    %v564 = vrot.slane %v563, 2
    %v565 = vmax.f32 %v563, %v564
    %v566 = vrot.slane %v565, 1
    %v567 = vmax.f32 %v565, %v566
    %v568 = vsub.f32 %v538, %v567
    %v569 = vmul.f32 %v568, 1.442695
    %v570 = vpow.pop %v569
    %v571 = vrot.slane %v570, 4
    %v572 = vadd.f32 %v570, %v571
    %v573 = vrot.slane %v572, 2
    %v574 = vadd.f32 %v572, %v573
    %v575 = vrot.slane %v574, 1
    %v576 = vadd.f32 %v574, %v575
    %v577 = vrcp.pop %v576
    %v578 = vmul.f32 %v570, %v577
    %v579 = vmul.f32 %v560, %v96
    %v580 = vmul.f32 %v561, %v97
    %v581 = vadd.f32 %v579, %v580
    %v582 = vrot.slane %v581, 4
    %v583 = vadd.f32 %v581, %v582
    %v584 = vrot.slane %v583, 2
    %v585 = vadd.f32 %v583, %v584
    %v586 = vrot.slane %v585, 1
    %v587 = vadd.f32 %v585, %v586
    %v588 = vmul.f32 %v578, %v98
    %v589 = vrot.slane %v588, 4
    %v590 = vadd.f32 %v588, %v589
    %v591 = vrot.slane %v590, 2
    %v592 = vadd.f32 %v590, %v591
    %v593 = vrot.slane %v592, 1
    %v594 = vadd.f32 %v592, %v593
    %v595 = vpack.c.bf16 %v587, %v587
    %v596 = vld [vmem:[#allocation8 + $0x10] sm:$0xff]
    %v597 = vld [vmem:[#allocation8 + $0x38] sm:$0xff]
    %v598 = vld [vmem:[#allocation8 + $0x60] sm:$0xff]
    %v599 = vld [vmem:[#allocation8 + $0x88] sm:$0xff]
    %v600 = vld [vmem:[#allocation8 + $0xb0] sm:$0xff]
    %v601 = vld [vmem:[#allocation8 + $0xd8] sm:$0xff]
    %v602 = vld [vmem:[#allocation8 + $0x100] sm:$0xff]
    %v603 = vld [vmem:[#allocation8 + $0x128] sm:$0xff]
    %v604 = vld [vmem:[#allocation8 + $0x150] sm:$0xff]
    %v605 = vld [vmem:[#allocation8 + $0x178] sm:$0xff]
    %v606 = vld [vmem:[#allocation8 + $0x1a0] sm:$0xff]
    %v607 = vld [vmem:[#allocation8 + $0x1c8] sm:$0xff]
    %v608 = vld [vmem:[#allocation8 + $0x1f0] sm:$0xff]
    %v609 = vld [vmem:[#allocation8 + $0x218] sm:$0xff]
    %v610 = vld [vmem:[#allocation8 + $0x240] sm:$0xff]
    %v611 = vld [vmem:[#allocation8 + $0x268] sm:$0xff]
    %v628 = vunpack.c.l.b16 %v596
    %v629 = vunpack.c.h.b16 %v596
    %v630 = vunpack.c.l.b16 %v597
    %v631 = vunpack.c.h.b16 %v597
    %v632 = vunpack.c.l.b16 %v598
    %v633 = vunpack.c.h.b16 %v598
    %v634 = vunpack.c.l.b16 %v599
    %v635 = vunpack.c.h.b16 %v599
    %v636 = vunpack.c.l.b16 %v600
    %v637 = vunpack.c.h.b16 %v600
    %v638 = vunpack.c.l.b16 %v601
    %v639 = vunpack.c.h.b16 %v601
    %v640 = vunpack.c.l.b16 %v602
    %v641 = vunpack.c.h.b16 %v602
    %v642 = vunpack.c.l.b16 %v603
    %v643 = vunpack.c.h.b16 %v603
    %v644 = vunpack.c.l.b16 %v604
    %v645 = vunpack.c.h.b16 %v604
    %v646 = vunpack.c.l.b16 %v605
    %v647 = vunpack.c.h.b16 %v605
    %v648 = vunpack.c.l.b16 %v606
    %v649 = vunpack.c.h.b16 %v606
    %v650 = vunpack.c.l.b16 %v607
    %v651 = vunpack.c.h.b16 %v607
    %v652 = vunpack.c.l.b16 %v608
    %v653 = vunpack.c.h.b16 %v608
    %v654 = vunpack.c.l.b16 %v609
    %v655 = vunpack.c.h.b16 %v609
    %v656 = vunpack.c.l.b16 %v610
    %v657 = vunpack.c.h.b16 %v610
    %v658 = vunpack.c.l.b16 %v611
    %v659 = vunpack.c.h.b16 %v611
    %v660 = vpack.c.b16 %v630, %v628
    %v661 = vpack.c.b16 %v631, %v629
    %v662 = vpack.c.b16 %v634, %v632
    %v663 = vpack.c.b16 %v635, %v633
    %v664 = vpack.c.b16 %v638, %v636
    %v665 = vpack.c.b16 %v639, %v637
    %v666 = vpack.c.b16 %v642, %v640
    %v667 = vpack.c.b16 %v643, %v641
    %v668 = vpack.c.b16 %v646, %v644
    %v669 = vpack.c.b16 %v647, %v645
    %v670 = vpack.c.b16 %v650, %v648
    %v671 = vpack.c.b16 %v651, %v649
    %v672 = vpack.c.b16 %v654, %v652
    %v673 = vpack.c.b16 %v655, %v653
    %v674 = vpack.c.b16 %v658, %v656
    %v675 = vpack.c.b16 %v659, %v657
    %692 = vmatpush.bf16.msra.mxu0 %v674
    %693 = vmatpush.bf16.msra.mxu0 %v672
    %694 = vmatpush.bf16.msra.mxu0 %v670
    %695 = vmatpush.bf16.msra.mxu0 %v668
    %696 = vmatpush.bf16.msra.mxu0 %v666
    %697 = vmatpush.bf16.msra.mxu0 %v664
    %698 = vmatpush.bf16.msra.mxu0 %v662
    %699 = vmatpush.bf16.msra.mxu0 %v660
    %700 = vmatmul.bf16.gmra.mxu0 %v595
    %v701 = vpop.f32.mrf.mxu0
    %v702 = vadd.f32 0.0, %v701
    %v703 = vpop.f32.mrf.mxu0
    %704 = vdwg.mxu0
    %705 = vmatpush.bf16.msra.mxu0 %v675
    %706 = vmatpush.bf16.msra.mxu0 %v673
    %707 = vmatpush.bf16.msra.mxu0 %v671
    %708 = vmatpush.bf16.msra.mxu0 %v669
    %709 = vmatpush.bf16.msra.mxu0 %v667
    %710 = vmatpush.bf16.msra.mxu0 %v665
    %711 = vmatpush.bf16.msra.mxu0 %v663
    %712 = vmatpush.bf16.msra.mxu0 %v661
    %713 = vmatmul.bf16.gmra.mxu0 %v595
    %v714 = vpop.f32.mrf.mxu0
    %v715 = vadd.f32 0.0, %v714
    %v716 = vpop.f32.mrf.mxu0
    %717 = vdwg.mxu0
    %v718 = vpack.c.bf16 %v594, %v594
    %v719 = vld [vmem:[#allocation8 + $0x18] sm:$0xff]
    %v720 = vld [vmem:[#allocation8 + $0x40] sm:$0xff]
    %v721 = vld [vmem:[#allocation8 + $0x68] sm:$0xff]
    %v722 = vld [vmem:[#allocation8 + $0x90] sm:$0xff]
    %v723 = vld [vmem:[#allocation8 + $0xb8] sm:$0xff]
    %v724 = vld [vmem:[#allocation8 + $0xe0] sm:$0xff]
    %v725 = vld [vmem:[#allocation8 + $0x108] sm:$0xff]
    %v726 = vld [vmem:[#allocation8 + $0x130] sm:$0xff]
    %v727 = vld [vmem:[#allocation8 + $0x158] sm:$0xff]
    %v728 = vld [vmem:[#allocation8 + $0x180] sm:$0xff]
    %v729 = vld [vmem:[#allocation8 + $0x1a8] sm:$0xff]
    %v730 = vld [vmem:[#allocation8 + $0x1d0] sm:$0xff]
    %v731 = vld [vmem:[#allocation8 + $0x1f8] sm:$0xff]
    %v732 = vld [vmem:[#allocation8 + $0x220] sm:$0xff]
    %v733 = vld [vmem:[#allocation8 + $0x248] sm:$0xff]
    %v734 = vld [vmem:[#allocation8 + $0x270] sm:$0xff]
    %v751 = vunpack.c.l.b16 %v719
    %v752 = vunpack.c.h.b16 %v719
    %v753 = vunpack.c.l.b16 %v720
    %v754 = vunpack.c.h.b16 %v720
    %v755 = vunpack.c.l.b16 %v721
    %v756 = vunpack.c.h.b16 %v721
    %v757 = vunpack.c.l.b16 %v722
    %v758 = vunpack.c.h.b16 %v722
    %v759 = vunpack.c.l.b16 %v723
    %v760 = vunpack.c.h.b16 %v723
    %v761 = vunpack.c.l.b16 %v724
    %v762 = vunpack.c.h.b16 %v724
    %v763 = vunpack.c.l.b16 %v725
    %v764 = vunpack.c.h.b16 %v725
    %v765 = vunpack.c.l.b16 %v726
    %v766 = vunpack.c.h.b16 %v726
    %v767 = vunpack.c.l.b16 %v727
    %v768 = vunpack.c.h.b16 %v727
    %v769 = vunpack.c.l.b16 %v728
    %v770 = vunpack.c.h.b16 %v728
    %v771 = vunpack.c.l.b16 %v729
    %v772 = vunpack.c.h.b16 %v729
    %v773 = vunpack.c.l.b16 %v730
    %v774 = vunpack.c.h.b16 %v730
    %v775 = vunpack.c.l.b16 %v731
    %v776 = vunpack.c.h.b16 %v731
    %v777 = vunpack.c.l.b16 %v732
    %v778 = vunpack.c.h.b16 %v732
    %v779 = vunpack.c.l.b16 %v733
    %v780 = vunpack.c.h.b16 %v733
    %v781 = vunpack.c.l.b16 %v734
    %v782 = vunpack.c.h.b16 %v734
    %v783 = vpack.c.b16 %v753, %v751
    %v784 = vpack.c.b16 %v754, %v752
    %v785 = vpack.c.b16 %v757, %v755
    %v786 = vpack.c.b16 %v758, %v756
    %v787 = vpack.c.b16 %v761, %v759
    %v788 = vpack.c.b16 %v762, %v760
    %v789 = vpack.c.b16 %v765, %v763
    %v790 = vpack.c.b16 %v766, %v764
    %v791 = vpack.c.b16 %v769, %v767
    %v792 = vpack.c.b16 %v770, %v768
    %v793 = vpack.c.b16 %v773, %v771
    %v794 = vpack.c.b16 %v774, %v772
    %v795 = vpack.c.b16 %v777, %v775
    %v796 = vpack.c.b16 %v778, %v776
    %v797 = vpack.c.b16 %v781, %v779
    %v798 = vpack.c.b16 %v782, %v780
    %815 = vmatpush.bf16.msra.mxu0 %v797
    %816 = vmatpush.bf16.msra.mxu0 %v795
    %817 = vmatpush.bf16.msra.mxu0 %v793
    %818 = vmatpush.bf16.msra.mxu0 %v791
    %819 = vmatpush.bf16.msra.mxu0 %v789
    %820 = vmatpush.bf16.msra.mxu0 %v787
    %821 = vmatpush.bf16.msra.mxu0 %v785
    %822 = vmatpush.bf16.msra.mxu0 %v783
    %823 = vmatmul.bf16.gmra.mxu0 %v718
    %v824 = vpop.f32.mrf.mxu0
    %v825 = vadd.f32 0.0, %v824
    %v826 = vpop.f32.mrf.mxu0
    %827 = vdwg.mxu0
    %828 = vmatpush.bf16.msra.mxu0 %v798
    %829 = vmatpush.bf16.msra.mxu0 %v796
    %830 = vmatpush.bf16.msra.mxu0 %v794
    %831 = vmatpush.bf16.msra.mxu0 %v792
    %832 = vmatpush.bf16.msra.mxu0 %v790
    %833 = vmatpush.bf16.msra.mxu0 %v788
    %834 = vmatpush.bf16.msra.mxu0 %v786
    %835 = vmatpush.bf16.msra.mxu0 %v784
    %836 = vmatmul.bf16.gmra.mxu0 %v718
    %v837 = vpop.f32.mrf.mxu0
    %v838 = vadd.f32 0.0, %v837
    %v839 = vpop.f32.mrf.mxu0
    %840 = vdwg.mxu0
    %v841 = vadd.f32 %v702, %v104
    %v842 = vadd.f32 %v825, %v105
    %v843 = vadd.f32 %v715, %v106
    %v844 = vadd.f32 %v843, %v351
    %v845 = vadd.f32 %v838, %v107
    %v846 = vadd.f32 %v845, %v351
    %v847 = vtanh.pop %v844
    %v848 = vmul.f32 %v847, %v108
    %vm849 = vcmask 1040384
    %v850 = vsel %vm849, %v848, 0.0
    %851 = vadd.xlane.f32.xlu0 %v850
    %v852 = vpop.xlane.xlu0 %851
    %v853 = vtanh.pop %v846
    %v854 = vmul.f32 %v853, %v108
    %v855 = vsel %vm849, %v854, 0.0
    %856 = vadd.xlane.f32.xlu0 %v855
    %v857 = vpop.xlane.xlu0 %856
    %v858 = vmax.f32 %v852, %v857
    %v859 = vsub.f32 %v852, %v858
    %v860 = vmul.f32 %v859, 1.442695
    %v861 = vpow.pop %v860
    %v862 = vsub.f32 %v857, %v858
    %v863 = vmul.f32 %v862, 1.442695
    %v864 = vpow.pop %v863
    %v865 = vadd.f32 %v861, 0.0
    %v866 = vadd.f32 %v864, 0.0
    %v867 = vadd.f32 %v865, %v866
    %v868 = vrcp.pop %v867
    %s869 = vtos %v868
    %s870 = vtos %v861
    %s871 = smul.f32 %s870, %s869
    %s872 = vtos %v864
    %s873 = smul.f32 %s872, %s869
    %v874 = vstv %s871
    %v875 = vmul.f32 %v874, %v841
    %v876 = vadd.f32 %v338, %v875
    %v877 = vstv %s873
    %v878 = vmul.f32 %v877, %v842
    %v879 = vadd.f32 %v876, %v878
    %v880 = vadd.f32 %v879, %v103
    %v881 = vtanh.pop %v880
    %882 = vst [vmem:[#allocation11] sm:$0x1] %v881
    // Predicated region
    $region42: #{tpu_custom_call.1} parent=1 // pred_check
      _
    $region43: #{tpu_custom_call.1} parent=1 // pred_check_branch
      %884 = sbr.rel (0) target = $region45
    $region44: #{tpu_custom_call.1} parent=1 // pred_region
      %886 = vsyncadd [#allocation4], 0
      %s888 = sshll.u32 [#allocation11], 4
      %s889 = int_to_ptr.vmem [resolvable:$true] %s888
      %s890 = sshll.u32 %s5, 4
      %s891 = int_to_ptr.hbm [resolvable:$true] %s890
      %893 = dma.vmem_to_hbm [thread:$0]  %s889, 16, %s891, [#allocation4]
    $region45: #{tpu_custom_call.1} parent=1 // pred_fallthru
      _
    // Predicated region
    $region46: #{tpu_custom_call.1} parent=1 // pred_check
      _
    $region47: #{tpu_custom_call.1} parent=1 // pred_check_branch
      %895 = sbr.rel (0) target = $region49
    $region48: #{tpu_custom_call.1} parent=1 // pred_region
      %897 = dma.done [#allocation4], 16
    $region49: #{tpu_custom_call.1} parent=1 // pred_fallthru
      _
    %898 = vsyncpa [#allocation3], 1
    %899 = vsyncpa [#allocation6], 1
    %900 = vsyncpa [#allocation9], 1
    %901 = vsyncpa [#allocation4], 1

</llo_original>
